<compile_context>
chip_gen: v7x
topology: tpu7x:2x2x1
jax: 0.10.0
libtpu: 0.0.40
codegen_flags: <defaults>
</compile_context>

<pallas_src>
import jax
import jax.numpy as jnp
from jax.experimental import pallas as pl
from jax.experimental.pallas import tpu as pltpu

LANES = 128          # batch elements per lane row
MAX_SUB = 1024       # max sublane rows per block  -> 3*1024*128*4B = 1.5 MiB/block
TARGET_STEPS = 16    # aim for ~16 grid steps on large batches


def mlp_kernel(w1_ref, b1_ref, w2_ref, b2_ref, w3_ref, b3_ref, x_ref, o_ref):
    # x_ref / o_ref : (3, SUB, 128) VMEM tiles (feature, sublane-row, lane).
    # w*/b*         : SMEM (scalar reads, broadcast-multiplied on the VPU).

    def dense(rows, w_ref, b_ref, n_in, n_out, relu):
        # rows: list of (SUB, 128) full-vreg slabs; returns list of same.
        out = []
        for j in range(n_out):
            acc = rows[0] * w_ref[0, j]
            for k in range(1, n_in):
                acc = acc + rows[k] * w_ref[k, j]
            acc = acc + b_ref[j]
            if relu:
                acc = jnp.maximum(acc, 0.0)
            out.append(acc)
        return out

    # Per-feature (SUB, 128) rows, loaded directly from the ref (no repack).
    x_rows = [x_ref[k].astype(jnp.float32) for k in range(3)]
    h1 = dense(x_rows, w1_ref, b1_ref, 3, 6, relu=True)
    h2 = dense(h1, w2_ref, b2_ref, 6, 6, relu=True)
    logits = dense(h2, w3_ref, b3_ref, 6, 3, relu=False)

    # Numerically stable softmax across the 3 output features, per batch lane.
    m = jnp.maximum(jnp.maximum(logits[0], logits[1]), logits[2])
    e = [jnp.exp(l - m) for l in logits]                 # EUP
    denom = e[0] + e[1] + e[2]
    inv = pl.reciprocal(denom, approx=True)              # EUP slot (free-ish)
    inv = inv * (2.0 - denom * inv)                      # Newton step -> f32 accuracy
    for j in range(3):                                   # straight per-row vst's
        o_ref[j] = (e[j] * inv).astype(o_ref.dtype)


def _choose_sub(rows, max_sub=MAX_SUB, target_steps=TARGET_STEPS):
    """Pick the sublane block size (multiple of 8, or the full extent)."""
    if rows <= 8:
        return rows                       # single full-extent block (always legal)
    sub = -(-rows // target_steps)        # ceil(rows / target_steps)
    sub = -(-sub // 8) * 8                # round up to a multiple of 8
    return min(sub, max_sub)


def mlp_forward(x, params):
    """x: [B, 3] (PyTorch layout, f32). Returns softmax probs [B, 3]."""
    w1, b1, w2, b2, w3, b3 = params
    B = x.shape[0]

    rows = pl.cdiv(B, LANES)                      # sublane rows needed
    sub = _choose_sub(rows)
    n_tiles = pl.cdiv(rows, sub)
    rows_pad = n_tiles * sub
    B_pad = rows_pad * LANES

    # Single fused relayout: pad -> transpose -> free reshape to (3, rows, 128).
    xp = x if B_pad == B else jnp.pad(x, ((0, B_pad - B), (0, 0)))
    xt = xp.T.reshape(3, rows_pad, LANES)

    smem_spec = pl.BlockSpec(memory_space=pltpu.MemorySpace.SMEM)
    tile_spec = pl.BlockSpec((3, sub, LANES), lambda i: (0, i, 0))

    out_t = pl.pallas_call(
        mlp_kernel,
        out_shape=jax.ShapeDtypeStruct((3, rows_pad, LANES), x.dtype),
        grid=(n_tiles,),
        in_specs=[smem_spec] * 6 + [tile_spec],
        out_specs=tile_spec,
        compiler_params=pltpu.CompilerParams(
            dimension_semantics=("parallel",),     # shard batch tiles across TCs
            vmem_limit_bytes=32 * 1024 * 1024,     # safe on v5e/v6e/v7x
        ),
    )(w1, b1, w2, b2, w3, b3, xt)

    # TODO(synk): in a feature-major end-to-end pipeline, return out_t directly
    # and skip this relayout (it costs one extra HBM read+write).
    return out_t.reshape(3, B_pad).T[:B]


def init_params(key):
    k1, k2, k3, k4, k5, k6 = jax.random.split(key, 6)
    # PyTorch nn.Linear stores weight as [out, in]; we keep [in, out] for x @ W.
    w1 = jax.random.normal(k1, (3, 6), jnp.float32) * 0.5
    b1 = jax.random.normal(k2, (6,), jnp.float32) * 0.1
    w2 = jax.random.normal(k3, (6, 6), jnp.float32) * 0.5
    b2 = jax.random.normal(k4, (6,), jnp.float32) * 0.1
    w3 = jax.random.normal(k5, (6, 3), jnp.float32) * 0.5
    b3 = jax.random.normal(k6, (3,), jnp.float32) * 0.1
    return w1, b1, w2, b2, w3, b3


def reference_forward(x, params):
    w1, b1, w2, b2, w3, b3 = params
    h1 = jax.nn.relu(x @ w1 + b1)
    h2 = jax.nn.relu(h1 @ w2 + b2)
    logits = h2 @ w3 + b3
    return jax.nn.softmax(logits, axis=1)


if __name__ == "__main__":
    key = jax.random.PRNGKey(0)
    kx, kp = jax.random.split(key)

    batch = 8
    x = jax.random.normal(kx, (batch, 3), jnp.float32)
    params = init_params(kp)

    out = mlp_forward(x, params)
    out = jax.block_until_ready(out)

    ref = reference_forward(x, params)
    assert out.shape == (batch, 3)
    assert jnp.allclose(out, ref, atol=1e-5, rtol=1e-5), "mismatch vs reference"
    assert jnp.allclose(jnp.sum(out, axis=1), 1.0, atol=1e-5)

    print("KERNEL_OK")
</pallas_src>

<mosaic_0001>
module attributes {stable_mosaic.version = 11 : i64} {
  func.func @mlp_kernel(%arg0: i32, %arg1: memref<3x6xf32, #tpu.memory_space<smem>>, %arg2: memref<6xf32, #tpu.memory_space<smem>>, %arg3: memref<6x6xf32, #tpu.memory_space<smem>>, %arg4: memref<6xf32, #tpu.memory_space<smem>>, %arg5: memref<6x3xf32, #tpu.memory_space<smem>>, %arg6: memref<3xf32, #tpu.memory_space<smem>>, %arg7: memref<3x1x128xf32, #tpu.memory_space<vmem>>, %arg8: memref<3x1x128xf32, #tpu.memory_space<vmem>>) attributes {dimension_semantics = [#tpu.dimension_semantics<parallel>], iteration_bounds = array<i64: 1>, scalar_prefetch = 0 : i64, scratch_operands = 0 : i64, tpu.core_type = #tpu.core_type<tc>, window_params = [{transform_indices = @transform_0, window_bounds = array<i64: 3, 6>}, {transform_indices = @transform_1, window_bounds = array<i64: 6>}, {transform_indices = @transform_2, window_bounds = array<i64: 6, 6>}, {transform_indices = @transform_3, window_bounds = array<i64: 6>}, {transform_indices = @transform_4, window_bounds = array<i64: 6, 3>}, {transform_indices = @transform_5, window_bounds = array<i64: 3>}, {transform_indices = @transform_6, window_bounds = array<i64: 3, 1, 128>}, {transform_indices = @transform_7, window_bounds = array<i64: 3, 1, 128>}]} {
    %c0 = arith.constant 0 : index
    %c0_0 = arith.constant 0 : index
    %c0_1 = arith.constant 0 : index
    %0 = vector.load %arg7[%c0, %c0_0, %c0_1] : memref<3x1x128xf32, #tpu.memory_space<vmem>>, vector<1x1x128xf32>
    %1 = vector.shape_cast %0 : vector<1x1x128xf32> to vector<1x128xf32>
    %c1 = arith.constant 1 : index
    %c0_2 = arith.constant 0 : index
    %c0_3 = arith.constant 0 : index
    %2 = vector.load %arg7[%c1, %c0_2, %c0_3] : memref<3x1x128xf32, #tpu.memory_space<vmem>>, vector<1x1x128xf32>
    %3 = vector.shape_cast %2 : vector<1x1x128xf32> to vector<1x128xf32>
    %c2 = arith.constant 2 : index
    %c0_4 = arith.constant 0 : index
    %c0_5 = arith.constant 0 : index
    %4 = vector.load %arg7[%c2, %c0_4, %c0_5] : memref<3x1x128xf32, #tpu.memory_space<vmem>>, vector<1x1x128xf32>
    %5 = vector.shape_cast %4 : vector<1x1x128xf32> to vector<1x128xf32>
    %c0_6 = arith.constant 0 : index
    %c0_7 = arith.constant 0 : index
    %6 = memref.load %arg1[%c0_6, %c0_7] : memref<3x6xf32, #tpu.memory_space<smem>>
    %7 = vector.broadcast %6 : f32 to vector<1x128xf32>
    %8 = arith.mulf %1, %7 : vector<1x128xf32>
    %c1_8 = arith.constant 1 : index
    %c0_9 = arith.constant 0 : index
    %9 = memref.load %arg1[%c1_8, %c0_9] : memref<3x6xf32, #tpu.memory_space<smem>>
    %10 = vector.broadcast %9 : f32 to vector<1x128xf32>
    %11 = arith.mulf %3, %10 : vector<1x128xf32>
    %12 = arith.addf %8, %11 : vector<1x128xf32>
    %c2_10 = arith.constant 2 : index
    %c0_11 = arith.constant 0 : index
    %13 = memref.load %arg1[%c2_10, %c0_11] : memref<3x6xf32, #tpu.memory_space<smem>>
    %14 = vector.broadcast %13 : f32 to vector<1x128xf32>
    %15 = arith.mulf %5, %14 : vector<1x128xf32>
    %16 = arith.addf %12, %15 : vector<1x128xf32>
    %c0_12 = arith.constant 0 : index
    %17 = memref.load %arg2[%c0_12] : memref<6xf32, #tpu.memory_space<smem>>
    %18 = vector.broadcast %17 : f32 to vector<1x128xf32>
    %19 = arith.addf %16, %18 : vector<1x128xf32>
    %cst = arith.constant 0.000000e+00 : f32
    %20 = vector.broadcast %cst : f32 to vector<1x128xf32>
    %21 = arith.maximumf %19, %20 : vector<1x128xf32>
    %c0_13 = arith.constant 0 : index
    %c1_14 = arith.constant 1 : index
    %22 = memref.load %arg1[%c0_13, %c1_14] : memref<3x6xf32, #tpu.memory_space<smem>>
    %23 = vector.broadcast %22 : f32 to vector<1x128xf32>
    %24 = arith.mulf %1, %23 : vector<1x128xf32>
    %c1_15 = arith.constant 1 : index
    %c1_16 = arith.constant 1 : index
    %25 = memref.load %arg1[%c1_15, %c1_16] : memref<3x6xf32, #tpu.memory_space<smem>>
    %26 = vector.broadcast %25 : f32 to vector<1x128xf32>
    %27 = arith.mulf %3, %26 : vector<1x128xf32>
    %28 = arith.addf %24, %27 : vector<1x128xf32>
    %c2_17 = arith.constant 2 : index
    %c1_18 = arith.constant 1 : index
    %29 = memref.load %arg1[%c2_17, %c1_18] : memref<3x6xf32, #tpu.memory_space<smem>>
    %30 = vector.broadcast %29 : f32 to vector<1x128xf32>
    %31 = arith.mulf %5, %30 : vector<1x128xf32>
    %32 = arith.addf %28, %31 : vector<1x128xf32>
    %c1_19 = arith.constant 1 : index
    %33 = memref.load %arg2[%c1_19] : memref<6xf32, #tpu.memory_space<smem>>
    %34 = vector.broadcast %33 : f32 to vector<1x128xf32>
    %35 = arith.addf %32, %34 : vector<1x128xf32>
    %cst_20 = arith.constant 0.000000e+00 : f32
    %36 = vector.broadcast %cst_20 : f32 to vector<1x128xf32>
    %37 = arith.maximumf %35, %36 : vector<1x128xf32>
    %c0_21 = arith.constant 0 : index
    %c2_22 = arith.constant 2 : index
    %38 = memref.load %arg1[%c0_21, %c2_22] : memref<3x6xf32, #tpu.memory_space<smem>>
    %39 = vector.broadcast %38 : f32 to vector<1x128xf32>
    %40 = arith.mulf %1, %39 : vector<1x128xf32>
    %c1_23 = arith.constant 1 : index
    %c2_24 = arith.constant 2 : index
    %41 = memref.load %arg1[%c1_23, %c2_24] : memref<3x6xf32, #tpu.memory_space<smem>>
    %42 = vector.broadcast %41 : f32 to vector<1x128xf32>
    %43 = arith.mulf %3, %42 : vector<1x128xf32>
    %44 = arith.addf %40, %43 : vector<1x128xf32>
    %c2_25 = arith.constant 2 : index
    %c2_26 = arith.constant 2 : index
    %45 = memref.load %arg1[%c2_25, %c2_26] : memref<3x6xf32, #tpu.memory_space<smem>>
    %46 = vector.broadcast %45 : f32 to vector<1x128xf32>
    %47 = arith.mulf %5, %46 : vector<1x128xf32>
    %48 = arith.addf %44, %47 : vector<1x128xf32>
    %c2_27 = arith.constant 2 : index
    %49 = memref.load %arg2[%c2_27] : memref<6xf32, #tpu.memory_space<smem>>
    %50 = vector.broadcast %49 : f32 to vector<1x128xf32>
    %51 = arith.addf %48, %50 : vector<1x128xf32>
    %cst_28 = arith.constant 0.000000e+00 : f32
    %52 = vector.broadcast %cst_28 : f32 to vector<1x128xf32>
    %53 = arith.maximumf %51, %52 : vector<1x128xf32>
    %c0_29 = arith.constant 0 : index
    %c3 = arith.constant 3 : index
    %54 = memref.load %arg1[%c0_29, %c3] : memref<3x6xf32, #tpu.memory_space<smem>>
    %55 = vector.broadcast %54 : f32 to vector<1x128xf32>
    %56 = arith.mulf %1, %55 : vector<1x128xf32>
    %c1_30 = arith.constant 1 : index
    %c3_31 = arith.constant 3 : index
    %57 = memref.load %arg1[%c1_30, %c3_31] : memref<3x6xf32, #tpu.memory_space<smem>>
    %58 = vector.broadcast %57 : f32 to vector<1x128xf32>
    %59 = arith.mulf %3, %58 : vector<1x128xf32>
    %60 = arith.addf %56, %59 : vector<1x128xf32>
    %c2_32 = arith.constant 2 : index
    %c3_33 = arith.constant 3 : index
    %61 = memref.load %arg1[%c2_32, %c3_33] : memref<3x6xf32, #tpu.memory_space<smem>>
    %62 = vector.broadcast %61 : f32 to vector<1x128xf32>
    %63 = arith.mulf %5, %62 : vector<1x128xf32>
    %64 = arith.addf %60, %63 : vector<1x128xf32>
    %c3_34 = arith.constant 3 : index
    %65 = memref.load %arg2[%c3_34] : memref<6xf32, #tpu.memory_space<smem>>
    %66 = vector.broadcast %65 : f32 to vector<1x128xf32>
    %67 = arith.addf %64, %66 : vector<1x128xf32>
    %cst_35 = arith.constant 0.000000e+00 : f32
    %68 = vector.broadcast %cst_35 : f32 to vector<1x128xf32>
    %69 = arith.maximumf %67, %68 : vector<1x128xf32>
    %c0_36 = arith.constant 0 : index
    %c4 = arith.constant 4 : index
    %70 = memref.load %arg1[%c0_36, %c4] : memref<3x6xf32, #tpu.memory_space<smem>>
    %71 = vector.broadcast %70 : f32 to vector<1x128xf32>
    %72 = arith.mulf %1, %71 : vector<1x128xf32>
    %c1_37 = arith.constant 1 : index
    %c4_38 = arith.constant 4 : index
    %73 = memref.load %arg1[%c1_37, %c4_38] : memref<3x6xf32, #tpu.memory_space<smem>>
    %74 = vector.broadcast %73 : f32 to vector<1x128xf32>
    %75 = arith.mulf %3, %74 : vector<1x128xf32>
    %76 = arith.addf %72, %75 : vector<1x128xf32>
    %c2_39 = arith.constant 2 : index
    %c4_40 = arith.constant 4 : index
    %77 = memref.load %arg1[%c2_39, %c4_40] : memref<3x6xf32, #tpu.memory_space<smem>>
    %78 = vector.broadcast %77 : f32 to vector<1x128xf32>
    %79 = arith.mulf %5, %78 : vector<1x128xf32>
    %80 = arith.addf %76, %79 : vector<1x128xf32>
    %c4_41 = arith.constant 4 : index
    %81 = memref.load %arg2[%c4_41] : memref<6xf32, #tpu.memory_space<smem>>
    %82 = vector.broadcast %81 : f32 to vector<1x128xf32>
    %83 = arith.addf %80, %82 : vector<1x128xf32>
    %cst_42 = arith.constant 0.000000e+00 : f32
    %84 = vector.broadcast %cst_42 : f32 to vector<1x128xf32>
    %85 = arith.maximumf %83, %84 : vector<1x128xf32>
    %c0_43 = arith.constant 0 : index
    %c5 = arith.constant 5 : index
    %86 = memref.load %arg1[%c0_43, %c5] : memref<3x6xf32, #tpu.memory_space<smem>>
    %87 = vector.broadcast %86 : f32 to vector<1x128xf32>
    %88 = arith.mulf %1, %87 : vector<1x128xf32>
    %c1_44 = arith.constant 1 : index
    %c5_45 = arith.constant 5 : index
    %89 = memref.load %arg1[%c1_44, %c5_45] : memref<3x6xf32, #tpu.memory_space<smem>>
    %90 = vector.broadcast %89 : f32 to vector<1x128xf32>
    %91 = arith.mulf %3, %90 : vector<1x128xf32>
    %92 = arith.addf %88, %91 : vector<1x128xf32>
    %c2_46 = arith.constant 2 : index
    %c5_47 = arith.constant 5 : index
    %93 = memref.load %arg1[%c2_46, %c5_47] : memref<3x6xf32, #tpu.memory_space<smem>>
    %94 = vector.broadcast %93 : f32 to vector<1x128xf32>
    %95 = arith.mulf %5, %94 : vector<1x128xf32>
    %96 = arith.addf %92, %95 : vector<1x128xf32>
    %c5_48 = arith.constant 5 : index
    %97 = memref.load %arg2[%c5_48] : memref<6xf32, #tpu.memory_space<smem>>
    %98 = vector.broadcast %97 : f32 to vector<1x128xf32>
    %99 = arith.addf %96, %98 : vector<1x128xf32>
    %cst_49 = arith.constant 0.000000e+00 : f32
    %100 = vector.broadcast %cst_49 : f32 to vector<1x128xf32>
    %101 = arith.maximumf %99, %100 : vector<1x128xf32>
    %c0_50 = arith.constant 0 : index
    %c0_51 = arith.constant 0 : index
    %102 = memref.load %arg3[%c0_50, %c0_51] : memref<6x6xf32, #tpu.memory_space<smem>>
    %103 = vector.broadcast %102 : f32 to vector<1x128xf32>
    %104 = arith.mulf %21, %103 : vector<1x128xf32>
    %c1_52 = arith.constant 1 : index
    %c0_53 = arith.constant 0 : index
    %105 = memref.load %arg3[%c1_52, %c0_53] : memref<6x6xf32, #tpu.memory_space<smem>>
    %106 = vector.broadcast %105 : f32 to vector<1x128xf32>
    %107 = arith.mulf %37, %106 : vector<1x128xf32>
    %108 = arith.addf %104, %107 : vector<1x128xf32>
    %c2_54 = arith.constant 2 : index
    %c0_55 = arith.constant 0 : index
    %109 = memref.load %arg3[%c2_54, %c0_55] : memref<6x6xf32, #tpu.memory_space<smem>>
    %110 = vector.broadcast %109 : f32 to vector<1x128xf32>
    %111 = arith.mulf %53, %110 : vector<1x128xf32>
    %112 = arith.addf %108, %111 : vector<1x128xf32>
    %c3_56 = arith.constant 3 : index
    %c0_57 = arith.constant 0 : index
    %113 = memref.load %arg3[%c3_56, %c0_57] : memref<6x6xf32, #tpu.memory_space<smem>>
    %114 = vector.broadcast %113 : f32 to vector<1x128xf32>
    %115 = arith.mulf %69, %114 : vector<1x128xf32>
    %116 = arith.addf %112, %115 : vector<1x128xf32>
    %c4_58 = arith.constant 4 : index
    %c0_59 = arith.constant 0 : index
    %117 = memref.load %arg3[%c4_58, %c0_59] : memref<6x6xf32, #tpu.memory_space<smem>>
    %118 = vector.broadcast %117 : f32 to vector<1x128xf32>
    %119 = arith.mulf %85, %118 : vector<1x128xf32>
    %120 = arith.addf %116, %119 : vector<1x128xf32>
    %c5_60 = arith.constant 5 : index
    %c0_61 = arith.constant 0 : index
    %121 = memref.load %arg3[%c5_60, %c0_61] : memref<6x6xf32, #tpu.memory_space<smem>>
    %122 = vector.broadcast %121 : f32 to vector<1x128xf32>
    %123 = arith.mulf %101, %122 : vector<1x128xf32>
    %124 = arith.addf %120, %123 : vector<1x128xf32>
    %c0_62 = arith.constant 0 : index
    %125 = memref.load %arg4[%c0_62] : memref<6xf32, #tpu.memory_space<smem>>
    %126 = vector.broadcast %125 : f32 to vector<1x128xf32>
    %127 = arith.addf %124, %126 : vector<1x128xf32>
    %cst_63 = arith.constant 0.000000e+00 : f32
    %128 = vector.broadcast %cst_63 : f32 to vector<1x128xf32>
    %129 = arith.maximumf %127, %128 : vector<1x128xf32>
    %c0_64 = arith.constant 0 : index
    %c1_65 = arith.constant 1 : index
    %130 = memref.load %arg3[%c0_64, %c1_65] : memref<6x6xf32, #tpu.memory_space<smem>>
    %131 = vector.broadcast %130 : f32 to vector<1x128xf32>
    %132 = arith.mulf %21, %131 : vector<1x128xf32>
    %c1_66 = arith.constant 1 : index
    %c1_67 = arith.constant 1 : index
    %133 = memref.load %arg3[%c1_66, %c1_67] : memref<6x6xf32, #tpu.memory_space<smem>>
    %134 = vector.broadcast %133 : f32 to vector<1x128xf32>
    %135 = arith.mulf %37, %134 : vector<1x128xf32>
    %136 = arith.addf %132, %135 : vector<1x128xf32>
    %c2_68 = arith.constant 2 : index
    %c1_69 = arith.constant 1 : index
    %137 = memref.load %arg3[%c2_68, %c1_69] : memref<6x6xf32, #tpu.memory_space<smem>>
    %138 = vector.broadcast %137 : f32 to vector<1x128xf32>
    %139 = arith.mulf %53, %138 : vector<1x128xf32>
    %140 = arith.addf %136, %139 : vector<1x128xf32>
    %c3_70 = arith.constant 3 : index
    %c1_71 = arith.constant 1 : index
    %141 = memref.load %arg3[%c3_70, %c1_71] : memref<6x6xf32, #tpu.memory_space<smem>>
    %142 = vector.broadcast %141 : f32 to vector<1x128xf32>
    %143 = arith.mulf %69, %142 : vector<1x128xf32>
    %144 = arith.addf %140, %143 : vector<1x128xf32>
    %c4_72 = arith.constant 4 : index
    %c1_73 = arith.constant 1 : index
    %145 = memref.load %arg3[%c4_72, %c1_73] : memref<6x6xf32, #tpu.memory_space<smem>>
    %146 = vector.broadcast %145 : f32 to vector<1x128xf32>
    %147 = arith.mulf %85, %146 : vector<1x128xf32>
    %148 = arith.addf %144, %147 : vector<1x128xf32>
    %c5_74 = arith.constant 5 : index
    %c1_75 = arith.constant 1 : index
    %149 = memref.load %arg3[%c5_74, %c1_75] : memref<6x6xf32, #tpu.memory_space<smem>>
    %150 = vector.broadcast %149 : f32 to vector<1x128xf32>
    %151 = arith.mulf %101, %150 : vector<1x128xf32>
    %152 = arith.addf %148, %151 : vector<1x128xf32>
    %c1_76 = arith.constant 1 : index
    %153 = memref.load %arg4[%c1_76] : memref<6xf32, #tpu.memory_space<smem>>
    %154 = vector.broadcast %153 : f32 to vector<1x128xf32>
    %155 = arith.addf %152, %154 : vector<1x128xf32>
    %cst_77 = arith.constant 0.000000e+00 : f32
    %156 = vector.broadcast %cst_77 : f32 to vector<1x128xf32>
    %157 = arith.maximumf %155, %156 : vector<1x128xf32>
    %c0_78 = arith.constant 0 : index
    %c2_79 = arith.constant 2 : index
    %158 = memref.load %arg3[%c0_78, %c2_79] : memref<6x6xf32, #tpu.memory_space<smem>>
    %159 = vector.broadcast %158 : f32 to vector<1x128xf32>
    %160 = arith.mulf %21, %159 : vector<1x128xf32>
    %c1_80 = arith.constant 1 : index
    %c2_81 = arith.constant 2 : index
    %161 = memref.load %arg3[%c1_80, %c2_81] : memref<6x6xf32, #tpu.memory_space<smem>>
    %162 = vector.broadcast %161 : f32 to vector<1x128xf32>
    %163 = arith.mulf %37, %162 : vector<1x128xf32>
    %164 = arith.addf %160, %163 : vector<1x128xf32>
    %c2_82 = arith.constant 2 : index
    %c2_83 = arith.constant 2 : index
    %165 = memref.load %arg3[%c2_82, %c2_83] : memref<6x6xf32, #tpu.memory_space<smem>>
    %166 = vector.broadcast %165 : f32 to vector<1x128xf32>
    %167 = arith.mulf %53, %166 : vector<1x128xf32>
    %168 = arith.addf %164, %167 : vector<1x128xf32>
    %c3_84 = arith.constant 3 : index
    %c2_85 = arith.constant 2 : index
    %169 = memref.load %arg3[%c3_84, %c2_85] : memref<6x6xf32, #tpu.memory_space<smem>>
    %170 = vector.broadcast %169 : f32 to vector<1x128xf32>
    %171 = arith.mulf %69, %170 : vector<1x128xf32>
    %172 = arith.addf %168, %171 : vector<1x128xf32>
    %c4_86 = arith.constant 4 : index
    %c2_87 = arith.constant 2 : index
    %173 = memref.load %arg3[%c4_86, %c2_87] : memref<6x6xf32, #tpu.memory_space<smem>>
    %174 = vector.broadcast %173 : f32 to vector<1x128xf32>
    %175 = arith.mulf %85, %174 : vector<1x128xf32>
    %176 = arith.addf %172, %175 : vector<1x128xf32>
    %c5_88 = arith.constant 5 : index
    %c2_89 = arith.constant 2 : index
    %177 = memref.load %arg3[%c5_88, %c2_89] : memref<6x6xf32, #tpu.memory_space<smem>>
    %178 = vector.broadcast %177 : f32 to vector<1x128xf32>
    %179 = arith.mulf %101, %178 : vector<1x128xf32>
    %180 = arith.addf %176, %179 : vector<1x128xf32>
    %c2_90 = arith.constant 2 : index
    %181 = memref.load %arg4[%c2_90] : memref<6xf32, #tpu.memory_space<smem>>
    %182 = vector.broadcast %181 : f32 to vector<1x128xf32>
    %183 = arith.addf %180, %182 : vector<1x128xf32>
    %cst_91 = arith.constant 0.000000e+00 : f32
    %184 = vector.broadcast %cst_91 : f32 to vector<1x128xf32>
    %185 = arith.maximumf %183, %184 : vector<1x128xf32>
    %c0_92 = arith.constant 0 : index
    %c3_93 = arith.constant 3 : index
    %186 = memref.load %arg3[%c0_92, %c3_93] : memref<6x6xf32, #tpu.memory_space<smem>>
    %187 = vector.broadcast %186 : f32 to vector<1x128xf32>
    %188 = arith.mulf %21, %187 : vector<1x128xf32>
    %c1_94 = arith.constant 1 : index
    %c3_95 = arith.constant 3 : index
    %189 = memref.load %arg3[%c1_94, %c3_95] : memref<6x6xf32, #tpu.memory_space<smem>>
    %190 = vector.broadcast %189 : f32 to vector<1x128xf32>
    %191 = arith.mulf %37, %190 : vector<1x128xf32>
    %192 = arith.addf %188, %191 : vector<1x128xf32>
    %c2_96 = arith.constant 2 : index
    %c3_97 = arith.constant 3 : index
    %193 = memref.load %arg3[%c2_96, %c3_97] : memref<6x6xf32, #tpu.memory_space<smem>>
    %194 = vector.broadcast %193 : f32 to vector<1x128xf32>
    %195 = arith.mulf %53, %194 : vector<1x128xf32>
    %196 = arith.addf %192, %195 : vector<1x128xf32>
    %c3_98 = arith.constant 3 : index
    %c3_99 = arith.constant 3 : index
    %197 = memref.load %arg3[%c3_98, %c3_99] : memref<6x6xf32, #tpu.memory_space<smem>>
    %198 = vector.broadcast %197 : f32 to vector<1x128xf32>
    %199 = arith.mulf %69, %198 : vector<1x128xf32>
    %200 = arith.addf %196, %199 : vector<1x128xf32>
    %c4_100 = arith.constant 4 : index
    %c3_101 = arith.constant 3 : index
    %201 = memref.load %arg3[%c4_100, %c3_101] : memref<6x6xf32, #tpu.memory_space<smem>>
    %202 = vector.broadcast %201 : f32 to vector<1x128xf32>
    %203 = arith.mulf %85, %202 : vector<1x128xf32>
    %204 = arith.addf %200, %203 : vector<1x128xf32>
    %c5_102 = arith.constant 5 : index
    %c3_103 = arith.constant 3 : index
    %205 = memref.load %arg3[%c5_102, %c3_103] : memref<6x6xf32, #tpu.memory_space<smem>>
    %206 = vector.broadcast %205 : f32 to vector<1x128xf32>
    %207 = arith.mulf %101, %206 : vector<1x128xf32>
    %208 = arith.addf %204, %207 : vector<1x128xf32>
    %c3_104 = arith.constant 3 : index
    %209 = memref.load %arg4[%c3_104] : memref<6xf32, #tpu.memory_space<smem>>
    %210 = vector.broadcast %209 : f32 to vector<1x128xf32>
    %211 = arith.addf %208, %210 : vector<1x128xf32>
    %cst_105 = arith.constant 0.000000e+00 : f32
    %212 = vector.broadcast %cst_105 : f32 to vector<1x128xf32>
    %213 = arith.maximumf %211, %212 : vector<1x128xf32>
    %c0_106 = arith.constant 0 : index
    %c4_107 = arith.constant 4 : index
    %214 = memref.load %arg3[%c0_106, %c4_107] : memref<6x6xf32, #tpu.memory_space<smem>>
    %215 = vector.broadcast %214 : f32 to vector<1x128xf32>
    %216 = arith.mulf %21, %215 : vector<1x128xf32>
    %c1_108 = arith.constant 1 : index
    %c4_109 = arith.constant 4 : index
    %217 = memref.load %arg3[%c1_108, %c4_109] : memref<6x6xf32, #tpu.memory_space<smem>>
    %218 = vector.broadcast %217 : f32 to vector<1x128xf32>
    %219 = arith.mulf %37, %218 : vector<1x128xf32>
    %220 = arith.addf %216, %219 : vector<1x128xf32>
    %c2_110 = arith.constant 2 : index
    %c4_111 = arith.constant 4 : index
    %221 = memref.load %arg3[%c2_110, %c4_111] : memref<6x6xf32, #tpu.memory_space<smem>>
    %222 = vector.broadcast %221 : f32 to vector<1x128xf32>
    %223 = arith.mulf %53, %222 : vector<1x128xf32>
    %224 = arith.addf %220, %223 : vector<1x128xf32>
    %c3_112 = arith.constant 3 : index
    %c4_113 = arith.constant 4 : index
    %225 = memref.load %arg3[%c3_112, %c4_113] : memref<6x6xf32, #tpu.memory_space<smem>>
    %226 = vector.broadcast %225 : f32 to vector<1x128xf32>
    %227 = arith.mulf %69, %226 : vector<1x128xf32>
    %228 = arith.addf %224, %227 : vector<1x128xf32>
    %c4_114 = arith.constant 4 : index
    %c4_115 = arith.constant 4 : index
    %229 = memref.load %arg3[%c4_114, %c4_115] : memref<6x6xf32, #tpu.memory_space<smem>>
    %230 = vector.broadcast %229 : f32 to vector<1x128xf32>
    %231 = arith.mulf %85, %230 : vector<1x128xf32>
    %232 = arith.addf %228, %231 : vector<1x128xf32>
    %c5_116 = arith.constant 5 : index
    %c4_117 = arith.constant 4 : index
    %233 = memref.load %arg3[%c5_116, %c4_117] : memref<6x6xf32, #tpu.memory_space<smem>>
    %234 = vector.broadcast %233 : f32 to vector<1x128xf32>
    %235 = arith.mulf %101, %234 : vector<1x128xf32>
    %236 = arith.addf %232, %235 : vector<1x128xf32>
    %c4_118 = arith.constant 4 : index
    %237 = memref.load %arg4[%c4_118] : memref<6xf32, #tpu.memory_space<smem>>
    %238 = vector.broadcast %237 : f32 to vector<1x128xf32>
    %239 = arith.addf %236, %238 : vector<1x128xf32>
    %cst_119 = arith.constant 0.000000e+00 : f32
    %240 = vector.broadcast %cst_119 : f32 to vector<1x128xf32>
    %241 = arith.maximumf %239, %240 : vector<1x128xf32>
    %c0_120 = arith.constant 0 : index
    %c5_121 = arith.constant 5 : index
    %242 = memref.load %arg3[%c0_120, %c5_121] : memref<6x6xf32, #tpu.memory_space<smem>>
    %243 = vector.broadcast %242 : f32 to vector<1x128xf32>
    %244 = arith.mulf %21, %243 : vector<1x128xf32>
    %c1_122 = arith.constant 1 : index
    %c5_123 = arith.constant 5 : index
    %245 = memref.load %arg3[%c1_122, %c5_123] : memref<6x6xf32, #tpu.memory_space<smem>>
    %246 = vector.broadcast %245 : f32 to vector<1x128xf32>
    %247 = arith.mulf %37, %246 : vector<1x128xf32>
    %248 = arith.addf %244, %247 : vector<1x128xf32>
    %c2_124 = arith.constant 2 : index
    %c5_125 = arith.constant 5 : index
    %249 = memref.load %arg3[%c2_124, %c5_125] : memref<6x6xf32, #tpu.memory_space<smem>>
    %250 = vector.broadcast %249 : f32 to vector<1x128xf32>
    %251 = arith.mulf %53, %250 : vector<1x128xf32>
    %252 = arith.addf %248, %251 : vector<1x128xf32>
    %c3_126 = arith.constant 3 : index
    %c5_127 = arith.constant 5 : index
    %253 = memref.load %arg3[%c3_126, %c5_127] : memref<6x6xf32, #tpu.memory_space<smem>>
    %254 = vector.broadcast %253 : f32 to vector<1x128xf32>
    %255 = arith.mulf %69, %254 : vector<1x128xf32>
    %256 = arith.addf %252, %255 : vector<1x128xf32>
    %c4_128 = arith.constant 4 : index
    %c5_129 = arith.constant 5 : index
    %257 = memref.load %arg3[%c4_128, %c5_129] : memref<6x6xf32, #tpu.memory_space<smem>>
    %258 = vector.broadcast %257 : f32 to vector<1x128xf32>
    %259 = arith.mulf %85, %258 : vector<1x128xf32>
    %260 = arith.addf %256, %259 : vector<1x128xf32>
    %c5_130 = arith.constant 5 : index
    %c5_131 = arith.constant 5 : index
    %261 = memref.load %arg3[%c5_130, %c5_131] : memref<6x6xf32, #tpu.memory_space<smem>>
    %262 = vector.broadcast %261 : f32 to vector<1x128xf32>
    %263 = arith.mulf %101, %262 : vector<1x128xf32>
    %264 = arith.addf %260, %263 : vector<1x128xf32>
    %c5_132 = arith.constant 5 : index
    %265 = memref.load %arg4[%c5_132] : memref<6xf32, #tpu.memory_space<smem>>
    %266 = vector.broadcast %265 : f32 to vector<1x128xf32>
    %267 = arith.addf %264, %266 : vector<1x128xf32>
    %cst_133 = arith.constant 0.000000e+00 : f32
    %268 = vector.broadcast %cst_133 : f32 to vector<1x128xf32>
    %269 = arith.maximumf %267, %268 : vector<1x128xf32>
    %c0_134 = arith.constant 0 : index
    %c0_135 = arith.constant 0 : index
    %270 = memref.load %arg5[%c0_134, %c0_135] : memref<6x3xf32, #tpu.memory_space<smem>>
    %271 = vector.broadcast %270 : f32 to vector<1x128xf32>
    %272 = arith.mulf %129, %271 : vector<1x128xf32>
    %c1_136 = arith.constant 1 : index
    %c0_137 = arith.constant 0 : index
    %273 = memref.load %arg5[%c1_136, %c0_137] : memref<6x3xf32, #tpu.memory_space<smem>>
    %274 = vector.broadcast %273 : f32 to vector<1x128xf32>
    %275 = arith.mulf %157, %274 : vector<1x128xf32>
    %276 = arith.addf %272, %275 : vector<1x128xf32>
    %c2_138 = arith.constant 2 : index
    %c0_139 = arith.constant 0 : index
    %277 = memref.load %arg5[%c2_138, %c0_139] : memref<6x3xf32, #tpu.memory_space<smem>>
    %278 = vector.broadcast %277 : f32 to vector<1x128xf32>
    %279 = arith.mulf %185, %278 : vector<1x128xf32>
    %280 = arith.addf %276, %279 : vector<1x128xf32>
    %c3_140 = arith.constant 3 : index
    %c0_141 = arith.constant 0 : index
    %281 = memref.load %arg5[%c3_140, %c0_141] : memref<6x3xf32, #tpu.memory_space<smem>>
    %282 = vector.broadcast %281 : f32 to vector<1x128xf32>
    %283 = arith.mulf %213, %282 : vector<1x128xf32>
    %284 = arith.addf %280, %283 : vector<1x128xf32>
    %c4_142 = arith.constant 4 : index
    %c0_143 = arith.constant 0 : index
    %285 = memref.load %arg5[%c4_142, %c0_143] : memref<6x3xf32, #tpu.memory_space<smem>>
    %286 = vector.broadcast %285 : f32 to vector<1x128xf32>
    %287 = arith.mulf %241, %286 : vector<1x128xf32>
    %288 = arith.addf %284, %287 : vector<1x128xf32>
    %c5_144 = arith.constant 5 : index
    %c0_145 = arith.constant 0 : index
    %289 = memref.load %arg5[%c5_144, %c0_145] : memref<6x3xf32, #tpu.memory_space<smem>>
    %290 = vector.broadcast %289 : f32 to vector<1x128xf32>
    %291 = arith.mulf %269, %290 : vector<1x128xf32>
    %292 = arith.addf %288, %291 : vector<1x128xf32>
    %c0_146 = arith.constant 0 : index
    %293 = memref.load %arg6[%c0_146] : memref<3xf32, #tpu.memory_space<smem>>
    %294 = vector.broadcast %293 : f32 to vector<1x128xf32>
    %295 = arith.addf %292, %294 : vector<1x128xf32>
    %c0_147 = arith.constant 0 : index
    %c1_148 = arith.constant 1 : index
    %296 = memref.load %arg5[%c0_147, %c1_148] : memref<6x3xf32, #tpu.memory_space<smem>>
    %297 = vector.broadcast %296 : f32 to vector<1x128xf32>
    %298 = arith.mulf %129, %297 : vector<1x128xf32>
    %c1_149 = arith.constant 1 : index
    %c1_150 = arith.constant 1 : index
    %299 = memref.load %arg5[%c1_149, %c1_150] : memref<6x3xf32, #tpu.memory_space<smem>>
    %300 = vector.broadcast %299 : f32 to vector<1x128xf32>
    %301 = arith.mulf %157, %300 : vector<1x128xf32>
    %302 = arith.addf %298, %301 : vector<1x128xf32>
    %c2_151 = arith.constant 2 : index
    %c1_152 = arith.constant 1 : index
    %303 = memref.load %arg5[%c2_151, %c1_152] : memref<6x3xf32, #tpu.memory_space<smem>>
    %304 = vector.broadcast %303 : f32 to vector<1x128xf32>
    %305 = arith.mulf %185, %304 : vector<1x128xf32>
    %306 = arith.addf %302, %305 : vector<1x128xf32>
    %c3_153 = arith.constant 3 : index
    %c1_154 = arith.constant 1 : index
    %307 = memref.load %arg5[%c3_153, %c1_154] : memref<6x3xf32, #tpu.memory_space<smem>>
    %308 = vector.broadcast %307 : f32 to vector<1x128xf32>
    %309 = arith.mulf %213, %308 : vector<1x128xf32>
    %310 = arith.addf %306, %309 : vector<1x128xf32>
    %c4_155 = arith.constant 4 : index
    %c1_156 = arith.constant 1 : index
    %311 = memref.load %arg5[%c4_155, %c1_156] : memref<6x3xf32, #tpu.memory_space<smem>>
    %312 = vector.broadcast %311 : f32 to vector<1x128xf32>
    %313 = arith.mulf %241, %312 : vector<1x128xf32>
    %314 = arith.addf %310, %313 : vector<1x128xf32>
    %c5_157 = arith.constant 5 : index
    %c1_158 = arith.constant 1 : index
    %315 = memref.load %arg5[%c5_157, %c1_158] : memref<6x3xf32, #tpu.memory_space<smem>>
    %316 = vector.broadcast %315 : f32 to vector<1x128xf32>
    %317 = arith.mulf %269, %316 : vector<1x128xf32>
    %318 = arith.addf %314, %317 : vector<1x128xf32>
    %c1_159 = arith.constant 1 : index
    %319 = memref.load %arg6[%c1_159] : memref<3xf32, #tpu.memory_space<smem>>
    %320 = vector.broadcast %319 : f32 to vector<1x128xf32>
    %321 = arith.addf %318, %320 : vector<1x128xf32>
    %c0_160 = arith.constant 0 : index
    %c2_161 = arith.constant 2 : index
    %322 = memref.load %arg5[%c0_160, %c2_161] : memref<6x3xf32, #tpu.memory_space<smem>>
    %323 = vector.broadcast %322 : f32 to vector<1x128xf32>
    %324 = arith.mulf %129, %323 : vector<1x128xf32>
    %c1_162 = arith.constant 1 : index
    %c2_163 = arith.constant 2 : index
    %325 = memref.load %arg5[%c1_162, %c2_163] : memref<6x3xf32, #tpu.memory_space<smem>>
    %326 = vector.broadcast %325 : f32 to vector<1x128xf32>
    %327 = arith.mulf %157, %326 : vector<1x128xf32>
    %328 = arith.addf %324, %327 : vector<1x128xf32>
    %c2_164 = arith.constant 2 : index
    %c2_165 = arith.constant 2 : index
    %329 = memref.load %arg5[%c2_164, %c2_165] : memref<6x3xf32, #tpu.memory_space<smem>>
    %330 = vector.broadcast %329 : f32 to vector<1x128xf32>
    %331 = arith.mulf %185, %330 : vector<1x128xf32>
    %332 = arith.addf %328, %331 : vector<1x128xf32>
    %c3_166 = arith.constant 3 : index
    %c2_167 = arith.constant 2 : index
    %333 = memref.load %arg5[%c3_166, %c2_167] : memref<6x3xf32, #tpu.memory_space<smem>>
    %334 = vector.broadcast %333 : f32 to vector<1x128xf32>
    %335 = arith.mulf %213, %334 : vector<1x128xf32>
    %336 = arith.addf %332, %335 : vector<1x128xf32>
    %c4_168 = arith.constant 4 : index
    %c2_169 = arith.constant 2 : index
    %337 = memref.load %arg5[%c4_168, %c2_169] : memref<6x3xf32, #tpu.memory_space<smem>>
    %338 = vector.broadcast %337 : f32 to vector<1x128xf32>
    %339 = arith.mulf %241, %338 : vector<1x128xf32>
    %340 = arith.addf %336, %339 : vector<1x128xf32>
    %c5_170 = arith.constant 5 : index
    %c2_171 = arith.constant 2 : index
    %341 = memref.load %arg5[%c5_170, %c2_171] : memref<6x3xf32, #tpu.memory_space<smem>>
    %342 = vector.broadcast %341 : f32 to vector<1x128xf32>
    %343 = arith.mulf %269, %342 : vector<1x128xf32>
    %344 = arith.addf %340, %343 : vector<1x128xf32>
    %c2_172 = arith.constant 2 : index
    %345 = memref.load %arg6[%c2_172] : memref<3xf32, #tpu.memory_space<smem>>
    %346 = vector.broadcast %345 : f32 to vector<1x128xf32>
    %347 = arith.addf %344, %346 : vector<1x128xf32>
    %348 = arith.maximumf %295, %321 : vector<1x128xf32>
    %349 = arith.maximumf %348, %347 : vector<1x128xf32>
    %350 = arith.subf %295, %349 : vector<1x128xf32>
    %351 = math.exp %350 : vector<1x128xf32>
    %352 = arith.subf %321, %349 : vector<1x128xf32>
    %353 = math.exp %352 : vector<1x128xf32>
    %354 = arith.subf %347, %349 : vector<1x128xf32>
    %355 = math.exp %354 : vector<1x128xf32>
    %356 = arith.addf %351, %353 : vector<1x128xf32>
    %357 = arith.addf %356, %355 : vector<1x128xf32>
    %358 = tpu.reciprocal %357 {approx = true} : vector<1x128xf32> -> vector<1x128xf32>
    %359 = arith.mulf %357, %358 : vector<1x128xf32>
    %cst_173 = arith.constant 2.000000e+00 : f32
    %360 = vector.broadcast %cst_173 : f32 to vector<1x128xf32>
    %361 = arith.subf %360, %359 : vector<1x128xf32>
    %362 = arith.mulf %358, %361 : vector<1x128xf32>
    %363 = arith.mulf %351, %362 : vector<1x128xf32>
    %c0_174 = arith.constant 0 : index
    %c0_175 = arith.constant 0 : index
    %c0_176 = arith.constant 0 : index
    %364 = vector.load %arg8[%c0_174, %c0_175, %c0_176] : memref<3x1x128xf32, #tpu.memory_space<vmem>>, vector<1x1x128xf32>
    %365 = vector.shape_cast %364 : vector<1x1x128xf32> to vector<1x128xf32>
    %366 = vector.shape_cast %363 : vector<1x128xf32> to vector<1x1x128xf32>
    tpu.vector_store %arg8[%c0_174, %c0_175, %c0_176], %366 {strides = array<i32>} : memref<3x1x128xf32, #tpu.memory_space<vmem>>, vector<1x1x128xf32>,
    %367 = arith.mulf %353, %362 : vector<1x128xf32>
    %c1_177 = arith.constant 1 : index
    %c0_178 = arith.constant 0 : index
    %c0_179 = arith.constant 0 : index
    %368 = vector.load %arg8[%c1_177, %c0_178, %c0_179] : memref<3x1x128xf32, #tpu.memory_space<vmem>>, vector<1x1x128xf32>
    %369 = vector.shape_cast %368 : vector<1x1x128xf32> to vector<1x128xf32>
    %370 = vector.shape_cast %367 : vector<1x128xf32> to vector<1x1x128xf32>
    tpu.vector_store %arg8[%c1_177, %c0_178, %c0_179], %370 {strides = array<i32>} : memref<3x1x128xf32, #tpu.memory_space<vmem>>, vector<1x1x128xf32>,
    %371 = arith.mulf %355, %362 : vector<1x128xf32>
    %c2_180 = arith.constant 2 : index
    %c0_181 = arith.constant 0 : index
    %c0_182 = arith.constant 0 : index
    %372 = vector.load %arg8[%c2_180, %c0_181, %c0_182] : memref<3x1x128xf32, #tpu.memory_space<vmem>>, vector<1x1x128xf32>
    %373 = vector.shape_cast %372 : vector<1x1x128xf32> to vector<1x128xf32>
    %374 = vector.shape_cast %371 : vector<1x128xf32> to vector<1x1x128xf32>
    tpu.vector_store %arg8[%c2_180, %c0_181, %c0_182], %374 {strides = array<i32>} : memref<3x1x128xf32, #tpu.memory_space<vmem>>, vector<1x1x128xf32>,
    return
  }
  func.func @transform_0(%arg0: i32) -> (i32, i32) {
    %c0_i32 = arith.constant 0 : i32
    %c0_i32_0 = arith.constant 0 : i32
    %c0_i32_1 = arith.constant 0 : i32
    return %c0_i32, %c0_i32_0 : i32, i32
  }
  func.func @transform_1(%arg0: i32) -> i32 {
    %c0_i32 = arith.constant 0 : i32
    %c0_i32_0 = arith.constant 0 : i32
    return %c0_i32 : i32
  }
  func.func @transform_2(%arg0: i32) -> (i32, i32) {
    %c0_i32 = arith.constant 0 : i32
    %c0_i32_0 = arith.constant 0 : i32
    %c0_i32_1 = arith.constant 0 : i32
    return %c0_i32, %c0_i32_0 : i32, i32
  }
  func.func @transform_3(%arg0: i32) -> i32 {
    %c0_i32 = arith.constant 0 : i32
    %c0_i32_0 = arith.constant 0 : i32
    return %c0_i32 : i32
  }
  func.func @transform_4(%arg0: i32) -> (i32, i32) {
    %c0_i32 = arith.constant 0 : i32
    %c0_i32_0 = arith.constant 0 : i32
    %c0_i32_1 = arith.constant 0 : i32
    return %c0_i32, %c0_i32_0 : i32, i32
  }
  func.func @transform_5(%arg0: i32) -> i32 {
    %c0_i32 = arith.constant 0 : i32
    %c0_i32_0 = arith.constant 0 : i32
    return %c0_i32 : i32
  }
  func.func @transform_6(%arg0: i32) -> (i32, i32, i32) {
    %c0_i32 = arith.constant 0 : i32
    %c0_i32_0 = arith.constant 0 : i32
    %c0_i32_1 = arith.constant 0 : i32
    return %c0_i32, %arg0, %c0_i32_0 : i32, i32, i32
  }
  func.func @transform_7(%arg0: i32) -> (i32, i32, i32) {
    %c0_i32 = arith.constant 0 : i32
    %c0_i32_0 = arith.constant 0 : i32
    %c0_i32_1 = arith.constant 0 : i32
    return %c0_i32, %arg0, %c0_i32_0 : i32, i32, i32
  }
}

</mosaic_0001>

<llo_original>
// kernel: tpu_custom_call.1
$region0: #{tpu_custom_call.1}
  #allocation0 [shape = 'u32[]', space=smem, size = 0x4, offset = 0x4, fixed_abs, tag = 'smem constant byte address 0x4 - core index']
  #allocation1 [shape = 'u32[144,128]{1,0:T(1,128)}', space=vmem, size = 0x12000, scoped, tag = 'internal scratch']
  %s0 = inlined_call_operand.vmem [shape: f32[3,6], index: 0, kind: input, shape index: {}]
  %s1 = inlined_call_operand.hbm [shape: f32[6], index: 1, kind: input, shape index: {}]
  %s2 = inlined_call_operand.vmem [shape: f32[6,6], index: 2, kind: input, shape index: {}]
  %s3 = inlined_call_operand.vmem [shape: f32[6], index: 3, kind: input, shape index: {}]
  %s4 = inlined_call_operand.vmem [shape: f32[6,3], index: 4, kind: input, shape index: {}]
  %s5 = inlined_call_operand.vmem [shape: f32[3], index: 5, kind: input, shape index: {}]
  %s6 = inlined_call_operand.vmem [shape: f32[3,1,128], index: 6, kind: input, shape index: {}]
  %s7 = inlined_call_operand.hbm [shape: f32[3,1,128], index: 7, kind: output, shape index: {}]
  %s8 = sld [smem:[#allocation0]]
  $region62: #{tpu_custom_call.1} parent=0
    _
  %s10 = ssub.s32 1, %s8
  %s11 = scalar_select 0, %s10, %s8
  $region1: #{tpu_custom_call.1} parent=0
    #allocation2 [shape = 'u8[2048]{0}', space=smem, size = 0x800, scoped, tag = 'input window, operand 0, single buffered']
    #allocation3 [shape = 's32[1]{0}', space=sflag, size = 0x4, scoped, tag = 'scoped memory for tpu_custom_call.1']
    #allocation4 [shape = 's32[1]{0}', space=sflag, size = 0x4, scoped, tag = 'scoped memory for tpu_custom_call.1']
    #allocation5 [shape = 's32[1]{0}', space=sflag, size = 0x4, scoped, tag = 'scoped memory for tpu_custom_call.1']
    #allocation6 [shape = 'u8[512]{0}', space=smem, size = 0x200, scoped, tag = 'input window, operand 1, single buffered']
    #allocation7 [shape = 'u8[4096]{0}', space=smem, size = 0x1000, scoped, tag = 'input window, operand 2, single buffered']
    #allocation8 [shape = 's32[1]{0}', space=sflag, size = 0x4, scoped, tag = 'scoped memory for tpu_custom_call.1']
    #allocation9 [shape = 'u8[512]{0}', space=smem, size = 0x200, scoped, tag = 'input window, operand 3, single buffered']
    #allocation10 [shape = 'u8[4096]{0}', space=smem, size = 0x1000, scoped, tag = 'input window, operand 4, single buffered']
    #allocation11 [shape = 's32[1]{0}', space=sflag, size = 0x4, scoped, tag = 'scoped memory for tpu_custom_call.1']
    #allocation12 [shape = 'u8[512]{0}', space=smem, size = 0x200, scoped, tag = 'input window, operand 5, single buffered']
    #allocation13 [shape = 'u8[1536]{0}', space=vmem, size = 0x800, scoped, tag = 'output window, operand 0, single buffered']
    %12 = vsyncpa [#allocation5], 0
    %13 = vsyncpa [#allocation4], 0
    %14 = vsyncpa [#allocation8], 0
    %15 = vsyncpa [#allocation11], 0
    %16 = vsyncpa [#allocation3], 0
    // Predicated region
    $region2: #{tpu_custom_call.1} parent=1 // pred_check
      _
    $region3: #{tpu_custom_call.1} parent=1 // pred_check_branch
      %18 = sbr.rel (0) target = $region5
    $region4: #{tpu_custom_call.1} parent=1 // pred_region
      %s20 = ssub.s32 64, 64
      %21 = vsyncadd [#allocation5], %s20
      %s23 = sshll.u32 %s0, 4
      %s24 = int_to_ptr.vmem [resolvable:$true] %s23
      %26 = dma.vmem_to_smem %s24, 64, [#allocation2], [#allocation5]
    $region5: #{tpu_custom_call.1} parent=1 // pred_fallthru
      _
    // Predicated region
    $region6: #{tpu_custom_call.1} parent=1 // pred_check
      _
    $region7: #{tpu_custom_call.1} parent=1 // pred_check_branch
      %28 = sbr.rel (0) target = $region9
    $region8: #{tpu_custom_call.1} parent=1 // pred_region
      %s30 = ssub.s32 16, 16
      %31 = vsyncadd [#allocation4], %s30
      %34 = dma.hbm_to_smem %s1, 16, [#allocation6], [#allocation4]
    $region9: #{tpu_custom_call.1} parent=1 // pred_fallthru
      _
    // Predicated region
    $region10: #{tpu_custom_call.1} parent=1 // pred_check
      _
    $region11: #{tpu_custom_call.1} parent=1 // pred_check_branch
      %36 = sbr.rel (0) target = $region13
    $region12: #{tpu_custom_call.1} parent=1 // pred_region
      %s38 = ssub.s32 128, 128
      %39 = vsyncadd [#allocation8], %s38
      %s41 = sshll.u32 %s2, 4
      %s42 = int_to_ptr.vmem [resolvable:$true] %s41
      %44 = dma.vmem_to_smem %s42, 128, [#allocation7], [#allocation8]
    $region13: #{tpu_custom_call.1} parent=1 // pred_fallthru
      _
    // Predicated region
    $region14: #{tpu_custom_call.1} parent=1 // pred_check
      _
    $region15: #{tpu_custom_call.1} parent=1 // pred_check_branch
      %46 = sbr.rel (0) target = $region17
    $region16: #{tpu_custom_call.1} parent=1 // pred_region
      %s48 = ssub.s32 16, 16
      %49 = vsyncadd [#allocation8], %s48
      %s51 = sshll.u32 %s3, 4
      %s52 = int_to_ptr.vmem [resolvable:$true] %s51
      %54 = dma.vmem_to_smem %s52, 16, [#allocation9], [#allocation8]
    $region17: #{tpu_custom_call.1} parent=1 // pred_fallthru
      _
    // Predicated region
    $region18: #{tpu_custom_call.1} parent=1 // pred_check
      _
    $region19: #{tpu_custom_call.1} parent=1 // pred_check_branch
      %56 = sbr.rel (0) target = $region21
    $region20: #{tpu_custom_call.1} parent=1 // pred_region
      %s58 = ssub.s32 128, 128
      %59 = vsyncadd [#allocation11], %s58
      %s61 = sshll.u32 %s4, 4
      %s62 = int_to_ptr.vmem [resolvable:$true] %s61
      %64 = dma.vmem_to_smem %s62, 128, [#allocation10], [#allocation11]
    $region21: #{tpu_custom_call.1} parent=1 // pred_fallthru
      _
    // Predicated region
    $region22: #{tpu_custom_call.1} parent=1 // pred_check
      _
    $region23: #{tpu_custom_call.1} parent=1 // pred_check_branch
      %66 = sbr.rel (0) target = $region25
    $region24: #{tpu_custom_call.1} parent=1 // pred_region
      %s68 = ssub.s32 16, 16
      %69 = vsyncadd [#allocation11], %s68
      %s71 = sshll.u32 %s5, 4
      %s72 = int_to_ptr.vmem [resolvable:$true] %s71
      %74 = dma.vmem_to_smem %s72, 16, [#allocation12], [#allocation11]
    $region25: #{tpu_custom_call.1} parent=1 // pred_fallthru
      _
    // Predicated region
    $region26: #{tpu_custom_call.1} parent=1 // pred_check
      _
    $region27: #{tpu_custom_call.1} parent=1 // pred_check_branch
      %76 = sbr.rel (0) target = $region29
    $region28: #{tpu_custom_call.1} parent=1 // pred_region
      _
    $region29: #{tpu_custom_call.1} parent=1 // pred_fallthru
      _
    // Predicated region
    $region30: #{tpu_custom_call.1} parent=1 // pred_check
      _
    $region31: #{tpu_custom_call.1} parent=1 // pred_check_branch
      %78 = sbr.rel (0) target = $region33
    $region32: #{tpu_custom_call.1} parent=1 // pred_region
      %79 = dma.done [#allocation5], 64
    $region33: #{tpu_custom_call.1} parent=1 // pred_fallthru
      _
    // Predicated region
    $region34: #{tpu_custom_call.1} parent=1 // pred_check
      _
    $region35: #{tpu_custom_call.1} parent=1 // pred_check_branch
      %81 = sbr.rel (0) target = $region37
    $region36: #{tpu_custom_call.1} parent=1 // pred_region
      %82 = dma.done [#allocation4], 16
    $region37: #{tpu_custom_call.1} parent=1 // pred_fallthru
      _
    // Predicated region
    $region38: #{tpu_custom_call.1} parent=1 // pred_check
      _
    $region39: #{tpu_custom_call.1} parent=1 // pred_check_branch
      %84 = sbr.rel (0) target = $region41
    $region40: #{tpu_custom_call.1} parent=1 // pred_region
      %85 = dma.done [#allocation8], 128
    $region41: #{tpu_custom_call.1} parent=1 // pred_fallthru
      _
    // Predicated region
    $region42: #{tpu_custom_call.1} parent=1 // pred_check
      _
    $region43: #{tpu_custom_call.1} parent=1 // pred_check_branch
      %87 = sbr.rel (0) target = $region45
    $region44: #{tpu_custom_call.1} parent=1 // pred_region
      %88 = dma.done [#allocation8], 16
    $region45: #{tpu_custom_call.1} parent=1 // pred_fallthru
      _
    // Predicated region
    $region46: #{tpu_custom_call.1} parent=1 // pred_check
      _
    $region47: #{tpu_custom_call.1} parent=1 // pred_check_branch
      %90 = sbr.rel (0) target = $region49
    $region48: #{tpu_custom_call.1} parent=1 // pred_region
      %91 = dma.done [#allocation11], 128
    $region49: #{tpu_custom_call.1} parent=1 // pred_fallthru
      _
    // Predicated region
    $region50: #{tpu_custom_call.1} parent=1 // pred_check
      _
    $region51: #{tpu_custom_call.1} parent=1 // pred_check_branch
      %93 = sbr.rel (0) target = $region53
    $region52: #{tpu_custom_call.1} parent=1 // pred_region
      %94 = dma.done [#allocation11], 16
    $region53: #{tpu_custom_call.1} parent=1 // pred_fallthru
      _
    %95 = sfence
    %v96 = vld [vmem:[%s6] sm:$0x1]
    %s97 = scalar_lea.vmem %s6, 1
    %v98 = vld [vmem:[%s97] sm:$0x1]
    %s99 = scalar_lea.vmem %s6, 2
    %v100 = vld [vmem:[%s99] sm:$0x1]
    %s101 = sld [smem:[#allocation2]]
    %v102 = vstv %s101
    %v103 = vmul.f32 %v96, %v102
    %s104 = sld [smem:[#allocation2 + $0x80]]
    %v105 = vstv %s104
    %v106 = vmul.f32 %v98, %v105
    %v107 = vadd.f32 %v103, %v106
    %s108 = sld [smem:[#allocation2 + $0x100]]
    %v109 = vstv %s108
    %v110 = vmul.f32 %v100, %v109
    %v111 = vadd.f32 %v107, %v110
    %s112 = sld [smem:[#allocation6]]
    %v113 = vstv %s112
    %v114 = vadd.f32 %v111, %v113
    %v115 = vmax.f32 %v114, 0.0
    %s116 = sld [smem:[#allocation2 + $0x1]]
    %v117 = vstv %s116
    %v118 = vmul.f32 %v96, %v117
    %s119 = sld [smem:[#allocation2 + $0x81]]
    %v120 = vstv %s119
    %v121 = vmul.f32 %v98, %v120
    %v122 = vadd.f32 %v118, %v121
    %s123 = sld [smem:[#allocation2 + $0x101]]
    %v124 = vstv %s123
    %v125 = vmul.f32 %v100, %v124
    %v126 = vadd.f32 %v122, %v125
    %s127 = sld [smem:[#allocation6 + $0x1]]
    %v128 = vstv %s127
    %v129 = vadd.f32 %v126, %v128
    %v130 = vmax.f32 %v129, 0.0
    %s131 = sld [smem:[#allocation2 + $0x2]]
    %v132 = vstv %s131
    %v133 = vmul.f32 %v96, %v132
    %s134 = sld [smem:[#allocation2 + $0x82]]
    %v135 = vstv %s134
    %v136 = vmul.f32 %v98, %v135
    %v137 = vadd.f32 %v133, %v136
    %s138 = sld [smem:[#allocation2 + $0x102]]
    %v139 = vstv %s138
    %v140 = vmul.f32 %v100, %v139
    %v141 = vadd.f32 %v137, %v140
    %s142 = sld [smem:[#allocation6 + $0x2]]
    %v143 = vstv %s142
    %v144 = vadd.f32 %v141, %v143
    %v145 = vmax.f32 %v144, 0.0
    %s146 = sld [smem:[#allocation2 + $0x3]]
    %v147 = vstv %s146
    %v148 = vmul.f32 %v96, %v147
    %s149 = sld [smem:[#allocation2 + $0x83]]
    %v150 = vstv %s149
    %v151 = vmul.f32 %v98, %v150
    %v152 = vadd.f32 %v148, %v151
    %s153 = sld [smem:[#allocation2 + $0x103]]
    %v154 = vstv %s153
    %v155 = vmul.f32 %v100, %v154
    %v156 = vadd.f32 %v152, %v155
    %s157 = sld [smem:[#allocation6 + $0x3]]
    %v158 = vstv %s157
    %v159 = vadd.f32 %v156, %v158
    %v160 = vmax.f32 %v159, 0.0
    %s161 = sld [smem:[#allocation2 + $0x4]]
    %v162 = vstv %s161
    %v163 = vmul.f32 %v96, %v162
    %s164 = sld [smem:[#allocation2 + $0x84]]
    %v165 = vstv %s164
    %v166 = vmul.f32 %v98, %v165
    %v167 = vadd.f32 %v163, %v166
    %s168 = sld [smem:[#allocation2 + $0x104]]
    %v169 = vstv %s168
    %v170 = vmul.f32 %v100, %v169
    %v171 = vadd.f32 %v167, %v170
    %s172 = sld [smem:[#allocation6 + $0x4]]
    %v173 = vstv %s172
    %v174 = vadd.f32 %v171, %v173
    %v175 = vmax.f32 %v174, 0.0
    %s176 = sld [smem:[#allocation2 + $0x5]]
    %v177 = vstv %s176
    %v178 = vmul.f32 %v96, %v177
    %s179 = sld [smem:[#allocation2 + $0x85]]
    %v180 = vstv %s179
    %v181 = vmul.f32 %v98, %v180
    %v182 = vadd.f32 %v178, %v181
    %s183 = sld [smem:[#allocation2 + $0x105]]
    %v184 = vstv %s183
    %v185 = vmul.f32 %v100, %v184
    %v186 = vadd.f32 %v182, %v185
    %s187 = sld [smem:[#allocation6 + $0x5]]
    %v188 = vstv %s187
    %v189 = vadd.f32 %v186, %v188
    %v190 = vmax.f32 %v189, 0.0
    %s191 = sld [smem:[#allocation7]]
    %v192 = vstv %s191
    %v193 = vmul.f32 %v115, %v192
    %s194 = sld [smem:[#allocation7 + $0x80]]
    %v195 = vstv %s194
    %v196 = vmul.f32 %v130, %v195
    %v197 = vadd.f32 %v193, %v196
    %s198 = sld [smem:[#allocation7 + $0x100]]
    %v199 = vstv %s198
    %v200 = vmul.f32 %v145, %v199
    %v201 = vadd.f32 %v197, %v200
    %s202 = sld [smem:[#allocation7 + $0x180]]
    %v203 = vstv %s202
    %v204 = vmul.f32 %v160, %v203
    %v205 = vadd.f32 %v201, %v204
    %s206 = sld [smem:[#allocation7 + $0x200]]
    %v207 = vstv %s206
    %v208 = vmul.f32 %v175, %v207
    %v209 = vadd.f32 %v205, %v208
    %s210 = sld [smem:[#allocation7 + $0x280]]
    %v211 = vstv %s210
    %v212 = vmul.f32 %v190, %v211
    %v213 = vadd.f32 %v209, %v212
    %s214 = sld [smem:[#allocation9]]
    %v215 = vstv %s214
    %v216 = vadd.f32 %v213, %v215
    %v217 = vmax.f32 %v216, 0.0
    %s218 = sld [smem:[#allocation7 + $0x1]]
    %v219 = vstv %s218
    %v220 = vmul.f32 %v115, %v219
    %s221 = sld [smem:[#allocation7 + $0x81]]
    %v222 = vstv %s221
    %v223 = vmul.f32 %v130, %v222
    %v224 = vadd.f32 %v220, %v223
    %s225 = sld [smem:[#allocation7 + $0x101]]
    %v226 = vstv %s225
    %v227 = vmul.f32 %v145, %v226
    %v228 = vadd.f32 %v224, %v227
    %s229 = sld [smem:[#allocation7 + $0x181]]
    %v230 = vstv %s229
    %v231 = vmul.f32 %v160, %v230
    %v232 = vadd.f32 %v228, %v231
    %s233 = sld [smem:[#allocation7 + $0x201]]
    %v234 = vstv %s233
    %v235 = vmul.f32 %v175, %v234
    %v236 = vadd.f32 %v232, %v235
    %s237 = sld [smem:[#allocation7 + $0x281]]
    %v238 = vstv %s237
    %v239 = vmul.f32 %v190, %v238
    %v240 = vadd.f32 %v236, %v239
    %s241 = sld [smem:[#allocation9 + $0x1]]
    %v242 = vstv %s241
    %v243 = vadd.f32 %v240, %v242
    %v244 = vmax.f32 %v243, 0.0
    %s245 = sld [smem:[#allocation7 + $0x2]]
    %v246 = vstv %s245
    %v247 = vmul.f32 %v115, %v246
    %s248 = sld [smem:[#allocation7 + $0x82]]
    %v249 = vstv %s248
    %v250 = vmul.f32 %v130, %v249
    %v251 = vadd.f32 %v247, %v250
    %s252 = sld [smem:[#allocation7 + $0x102]]
    %v253 = vstv %s252
    %v254 = vmul.f32 %v145, %v253
    %v255 = vadd.f32 %v251, %v254
    %s256 = sld [smem:[#allocation7 + $0x182]]
    %v257 = vstv %s256
    %v258 = vmul.f32 %v160, %v257
    %v259 = vadd.f32 %v255, %v258
    %s260 = sld [smem:[#allocation7 + $0x202]]
    %v261 = vstv %s260
    %v262 = vmul.f32 %v175, %v261
    %v263 = vadd.f32 %v259, %v262
    %s264 = sld [smem:[#allocation7 + $0x282]]
    %v265 = vstv %s264
    %v266 = vmul.f32 %v190, %v265
    %v267 = vadd.f32 %v263, %v266
    %s268 = sld [smem:[#allocation9 + $0x2]]
    %v269 = vstv %s268
    %v270 = vadd.f32 %v267, %v269
    %v271 = vmax.f32 %v270, 0.0
    %s272 = sld [smem:[#allocation7 + $0x3]]
    %v273 = vstv %s272
    %v274 = vmul.f32 %v115, %v273
    %s275 = sld [smem:[#allocation7 + $0x83]]
    %v276 = vstv %s275
    %v277 = vmul.f32 %v130, %v276
    %v278 = vadd.f32 %v274, %v277
    %s279 = sld [smem:[#allocation7 + $0x103]]
    %v280 = vstv %s279
    %v281 = vmul.f32 %v145, %v280
    %v282 = vadd.f32 %v278, %v281
    %s283 = sld [smem:[#allocation7 + $0x183]]
    %v284 = vstv %s283
    %v285 = vmul.f32 %v160, %v284
    %v286 = vadd.f32 %v282, %v285
    %s287 = sld [smem:[#allocation7 + $0x203]]
    %v288 = vstv %s287
    %v289 = vmul.f32 %v175, %v288
    %v290 = vadd.f32 %v286, %v289
    %s291 = sld [smem:[#allocation7 + $0x283]]
    %v292 = vstv %s291
    %v293 = vmul.f32 %v190, %v292
    %v294 = vadd.f32 %v290, %v293
    %s295 = sld [smem:[#allocation9 + $0x3]]
    %v296 = vstv %s295
    %v297 = vadd.f32 %v294, %v296
    %v298 = vmax.f32 %v297, 0.0
    %s299 = sld [smem:[#allocation7 + $0x4]]
    %v300 = vstv %s299
    %v301 = vmul.f32 %v115, %v300
    %s302 = sld [smem:[#allocation7 + $0x84]]
    %v303 = vstv %s302
    %v304 = vmul.f32 %v130, %v303
    %v305 = vadd.f32 %v301, %v304
    %s306 = sld [smem:[#allocation7 + $0x104]]
    %v307 = vstv %s306
    %v308 = vmul.f32 %v145, %v307
    %v309 = vadd.f32 %v305, %v308
    %s310 = sld [smem:[#allocation7 + $0x184]]
    %v311 = vstv %s310
    %v312 = vmul.f32 %v160, %v311
    %v313 = vadd.f32 %v309, %v312
    %s314 = sld [smem:[#allocation7 + $0x204]]
    %v315 = vstv %s314
    %v316 = vmul.f32 %v175, %v315
    %v317 = vadd.f32 %v313, %v316
    %s318 = sld [smem:[#allocation7 + $0x284]]
    %v319 = vstv %s318
    %v320 = vmul.f32 %v190, %v319
    %v321 = vadd.f32 %v317, %v320
    %s322 = sld [smem:[#allocation9 + $0x4]]
    %v323 = vstv %s322
    %v324 = vadd.f32 %v321, %v323
    %v325 = vmax.f32 %v324, 0.0
    %s326 = sld [smem:[#allocation7 + $0x5]]
    %v327 = vstv %s326
    %v328 = vmul.f32 %v115, %v327
    %s329 = sld [smem:[#allocation7 + $0x85]]
    %v330 = vstv %s329
    %v331 = vmul.f32 %v130, %v330
    %v332 = vadd.f32 %v328, %v331
    %s333 = sld [smem:[#allocation7 + $0x105]]
    %v334 = vstv %s333
    %v335 = vmul.f32 %v145, %v334
    %v336 = vadd.f32 %v332, %v335
    %s337 = sld [smem:[#allocation7 + $0x185]]
    %v338 = vstv %s337
    %v339 = vmul.f32 %v160, %v338
    %v340 = vadd.f32 %v336, %v339
    %s341 = sld [smem:[#allocation7 + $0x205]]
    %v342 = vstv %s341
    %v343 = vmul.f32 %v175, %v342
    %v344 = vadd.f32 %v340, %v343
    %s345 = sld [smem:[#allocation7 + $0x285]]
    %v346 = vstv %s345
    %v347 = vmul.f32 %v190, %v346
    %v348 = vadd.f32 %v344, %v347
    %s349 = sld [smem:[#allocation9 + $0x5]]
    %v350 = vstv %s349
    %v351 = vadd.f32 %v348, %v350
    %v352 = vmax.f32 %v351, 0.0
    %s353 = sld [smem:[#allocation10]]
    %v354 = vstv %s353
    %v355 = vmul.f32 %v217, %v354
    %s356 = sld [smem:[#allocation10 + $0x80]]
    %v357 = vstv %s356
    %v358 = vmul.f32 %v244, %v357
    %v359 = vadd.f32 %v355, %v358
    %s360 = sld [smem:[#allocation10 + $0x100]]
    %v361 = vstv %s360
    %v362 = vmul.f32 %v271, %v361
    %v363 = vadd.f32 %v359, %v362
    %s364 = sld [smem:[#allocation10 + $0x180]]
    %v365 = vstv %s364
    %v366 = vmul.f32 %v298, %v365
    %v367 = vadd.f32 %v363, %v366
    %s368 = sld [smem:[#allocation10 + $0x200]]
    %v369 = vstv %s368
    %v370 = vmul.f32 %v325, %v369
    %v371 = vadd.f32 %v367, %v370
    %s372 = sld [smem:[#allocation10 + $0x280]]
    %v373 = vstv %s372
    %v374 = vmul.f32 %v352, %v373
    %v375 = vadd.f32 %v371, %v374
    %s376 = sld [smem:[#allocation12]]
    %v377 = vstv %s376
    %v378 = vadd.f32 %v375, %v377
    %s379 = sld [smem:[#allocation10 + $0x1]]
    %v380 = vstv %s379
    %v381 = vmul.f32 %v217, %v380
    %s382 = sld [smem:[#allocation10 + $0x81]]
    %v383 = vstv %s382
    %v384 = vmul.f32 %v244, %v383
    %v385 = vadd.f32 %v381, %v384
    %s386 = sld [smem:[#allocation10 + $0x101]]
    %v387 = vstv %s386
    %v388 = vmul.f32 %v271, %v387
    %v389 = vadd.f32 %v385, %v388
    %s390 = sld [smem:[#allocation10 + $0x181]]
    %v391 = vstv %s390
    %v392 = vmul.f32 %v298, %v391
    %v393 = vadd.f32 %v389, %v392
    %s394 = sld [smem:[#allocation10 + $0x201]]
    %v395 = vstv %s394
    %v396 = vmul.f32 %v325, %v395
    %v397 = vadd.f32 %v393, %v396
    %s398 = sld [smem:[#allocation10 + $0x281]]
    %v399 = vstv %s398
    %v400 = vmul.f32 %v352, %v399
    %v401 = vadd.f32 %v397, %v400
    %s402 = sld [smem:[#allocation12 + $0x1]]
    %v403 = vstv %s402
    %v404 = vadd.f32 %v401, %v403
    %s405 = sld [smem:[#allocation10 + $0x2]]
    %v406 = vstv %s405
    %v407 = vmul.f32 %v217, %v406
    %s408 = sld [smem:[#allocation10 + $0x82]]
    %v409 = vstv %s408
    %v410 = vmul.f32 %v244, %v409
    %v411 = vadd.f32 %v407, %v410
    %s412 = sld [smem:[#allocation10 + $0x102]]
    %v413 = vstv %s412
    %v414 = vmul.f32 %v271, %v413
    %v415 = vadd.f32 %v411, %v414
    %s416 = sld [smem:[#allocation10 + $0x182]]
    %v417 = vstv %s416
    %v418 = vmul.f32 %v298, %v417
    %v419 = vadd.f32 %v415, %v418
    %s420 = sld [smem:[#allocation10 + $0x202]]
    %v421 = vstv %s420
    %v422 = vmul.f32 %v325, %v421
    %v423 = vadd.f32 %v419, %v422
    %s424 = sld [smem:[#allocation10 + $0x282]]
    %v425 = vstv %s424
    %v426 = vmul.f32 %v352, %v425
    %v427 = vadd.f32 %v423, %v426
    %s428 = sld [smem:[#allocation12 + $0x2]]
    %v429 = vstv %s428
    %v430 = vadd.f32 %v427, %v429
    %v431 = vmax.f32 %v378, %v404
    %v432 = vmax.f32 %v431, %v430
    %v433 = vsub.f32 %v378, %v432
    %v434 = vmul.f32 %v433, 1.442695
    %v435 = vpow.pop %v434
    %v436 = vsub.f32 %v404, %v432
    %v437 = vmul.f32 %v436, 1.442695
    %v438 = vpow.pop %v437
    %v439 = vsub.f32 %v430, %v432
    %v440 = vmul.f32 %v439, 1.442695
    %v441 = vpow.pop %v440
    %v442 = vadd.f32 %v435, %v438
    %v443 = vadd.f32 %v442, %v441
    %v444 = vrcp.pop %v443
    %v445 = vmul.f32 %v443, %v444
    %v446 = vsub.f32 2.0, %v445
    %v447 = vmul.f32 %v444, %v446
    %v448 = vmul.f32 %v435, %v447
    %449 = vst [vmem:[#allocation13] sm:$0x1] %v448
    %v450 = vmul.f32 %v438, %v447
    %s451 = scalar_lea.vmem [#allocation13], 1
    %452 = vst [vmem:[%s451] sm:$0x1] %v450
    %v453 = vmul.f32 %v441, %v447
    %s454 = scalar_lea.vmem [#allocation13], 2
    %455 = vst [vmem:[%s454] sm:$0x1] %v453
    // Predicated region
    $region54: #{tpu_custom_call.1} parent=1 // pred_check
      _
    $region55: #{tpu_custom_call.1} parent=1 // pred_check_branch
      %457 = sbr.rel (0) target = $region57
    $region56: #{tpu_custom_call.1} parent=1 // pred_region
      %s459 = ssub.s32 48, 48
      %460 = vsyncadd [#allocation3], %s459
      %s461 = sshll.u32 [#allocation13], 4
      %s462 = int_to_ptr.vmem [resolvable:$true] %s461
      %467 = dma.vmem_to_hbm [thread:$0]  %s462, 48, %s7, [#allocation3], 16, 16, 1
    $region57: #{tpu_custom_call.1} parent=1 // pred_fallthru
      _
    // Predicated region
    $region58: #{tpu_custom_call.1} parent=1 // pred_check
      _
    $region59: #{tpu_custom_call.1} parent=1 // pred_check_branch
      %469 = sbr.rel (0) target = $region61
    $region60: #{tpu_custom_call.1} parent=1 // pred_region
      %470 = dma.done [#allocation3], 48
    $region61: #{tpu_custom_call.1} parent=1 // pred_fallthru
      _
    %471 = vsyncpa [#allocation3], 1
    %472 = vsyncpa [#allocation4], 1
    %473 = vsyncpa [#allocation5], 1
    %474 = vsyncpa [#allocation8], 1
    %475 = vsyncpa [#allocation11], 1

</llo_original>
